<compile_context>
chip_gen: v5e
topology: v5e:2x2
jax: 0.10.0
libtpu: 0.0.40
codegen_flags: <defaults>
</compile_context>

<pallas_src>
import functools

import jax
import jax.numpy as jnp
import numpy as np
from jax.experimental import pallas as pl
from jax.experimental.pallas import tpu as pltpu

_EPS = 1e-8
_Y_COEF = (65.481, 128.553, 24.966)


def _round_up(x, m):
    return ((x + m - 1) // m) * m


def _pick_tn(n):
    """Batch tile: multiple of 8 when possible, preferring >=2 blocks (megacore)."""
    for tn in (32, 16, 8):
        if n % tn == 0 and n // tn >= 2:
            return tn
    if n % 8 == 0:
        return 8
    return n


def _select_tiling(n, d, itemsize, c_in, target_block_bytes):
    """Pick (tn, tile_d, d_padded). tile_d is always a multiple of 128."""
    tn = _pick_tn(n)
    d_pad = _round_up(d, 128)
    # VMEM bytes per D-column of one input block (incl. sublane padding).
    if c_in == 1:
        rows = _round_up(tn, 8)
    else:
        rows = tn * _round_up(c_in, 8)
    cap = (target_block_bytes // (rows * itemsize)) // 128 * 128
    cap = max(128, min(cap, 128 * 128))  # bound the in-kernel lane-block unroll
    if cap >= d_pad:
        return tn, d_pad, d_pad
    # Prefer a tile that divides the 128-aligned D (avoids extra zero padding).
    tile = None
    lo = max(128, cap // 2)
    for cand in range(cap, lo - 1, -128):
        if d_pad % cand == 0:
            tile = cand
            break
    if tile is None:
        tile = cap
        d_pad = _round_up(d_pad, tile)
    return tn, tile, d_pad


def _psnr_kernel(pred_ref, targ_ref, out_ref, acc_ref, *, inv_d, tile_d, to_y):
    """Accumulate per-sample SSE lane-wide; finalize log(mse + eps) per sample.

    pred_ref / targ_ref : (tn, tile_d) or (tn, 3, tile_d) VMEM tiles (native dtype)
    out_ref             : (tn, 1) f32 per-sample log(mse + eps)
    acc_ref             : (tn, 128) f32 lane-wide running SSE
    """
    k = pl.program_id(1)

    @pl.when(k == 0)
    def _():
        acc_ref[...] = jnp.zeros_like(acc_ref)

    if to_y:
        c0, c1, c2 = _Y_COEF
        p = (pred_ref[:, 0, :].astype(jnp.float32) * c0
             + pred_ref[:, 1, :].astype(jnp.float32) * c1
             + pred_ref[:, 2, :].astype(jnp.float32) * c2
             + 16.0) * (1.0 / 255.0)
        t = (targ_ref[:, 0, :].astype(jnp.float32) * c0
             + targ_ref[:, 1, :].astype(jnp.float32) * c1
             + targ_ref[:, 2, :].astype(jnp.float32) * c2
             + 16.0) * (1.0 / 255.0)
    else:
        p = pred_ref[...].astype(jnp.float32)
        t = targ_ref[...].astype(jnp.float32)

    diff = p - t
    sq = diff * diff  # (tn, tile_d)

    # Lane-wide accumulation: fold tile_d into the 128-lane accumulator with
    # pure VPU adds (128-aligned static slices are free vreg picks); the single
    # cross-lane (XLU) reduce runs once in the epilogue below.
    partial = sq[:, 0:128]
    for c in range(1, tile_d // 128):
        partial = partial + sq[:, c * 128:(c + 1) * 128]
    acc_ref[...] += partial

    @pl.when(k == pl.num_programs(1) - 1)
    def _():
        sse = jnp.sum(acc_ref[...], axis=-1, keepdims=True)  # (tn, 1)
        mse = sse * jnp.float32(inv_d)
        out_ref[...] = jnp.log(mse + jnp.float32(_EPS))


def psnr_loss(pred, target, *, loss_weight=1.0, toY=False, target_block_bytes=2 << 20):
    """JAX/Pallas equivalent of PSNRLoss.forward. pred/target: (N, C, H, W)."""
    assert pred.ndim == 4 and target.shape == pred.shape
    n, c, h, w = pred.shape
    scale = 10.0 / np.log(10.0)

    if toY:
        assert c == 3, "toY=True requires 3-channel (RGB) inputs"
        d = h * w
        x = pred.reshape(n, 3, d)
        y = target.reshape(n, 3, d)
        c_in = 3
    else:
        d = c * h * w
        x = pred.reshape(n, d)
        y = target.reshape(n, d)
        c_in = 1

    itemsize = jnp.dtype(pred.dtype).itemsize
    tn, tile_d, d_pad = _select_tiling(n, d, itemsize, c_in, target_block_bytes)
    assert tile_d % 128 == 0

    if d_pad != d:
        # Zero padding contributes zero squared difference (for toY the +16
        # offset cancels in the difference), so SSE is unaffected.
        pad = ((0, 0),) * (x.ndim - 1) + ((0, d_pad - d),)
        x = jnp.pad(x, pad)
        y = jnp.pad(y, pad)

    nb = n // tn
    kc = d_pad // tile_d

    if toY:
        in_spec = pl.BlockSpec((tn, 3, tile_d), lambda i, k: (i, 0, k))
    else:
        in_spec = pl.BlockSpec((tn, tile_d), lambda i, k: (i, k))
    out_spec = pl.BlockSpec((tn, 1), lambda i, k: (i, 0))

    kernel = functools.partial(_psnr_kernel, inv_d=1.0 / d, tile_d=tile_d, to_y=toY)

    log_mse = pl.pallas_call(
        kernel,
        out_shape=jax.ShapeDtypeStruct((n, 1), jnp.float32),
        grid_spec=pltpu.PrefetchScalarGridSpec(
            num_scalar_prefetch=0,
            grid=(nb, kc),  # batch blocks (parallel), then D chunks (reduction)
            in_specs=[in_spec, in_spec],
            out_specs=out_spec,
            scratch_shapes=[pltpu.VMEM((tn, 128), jnp.float32)],
        ),
        compiler_params=pltpu.CompilerParams(
            dimension_semantics=("parallel", "arbitrary"),
        ),
    )(x, y)

    # loss_weight / scale applied outside the kernel (no recompile per weight).
    return jnp.float32(float(loss_weight) * scale) * jnp.mean(log_mse)


def _psnr_loss_ref(pred, target, *, loss_weight=1.0, toY=False):
    """Pure-JAX reference matching the PyTorch module."""
    scale = 10.0 / np.log(10.0)
    if toY:
        coef = jnp.asarray(_Y_COEF, dtype=pred.dtype).reshape(1, 3, 1, 1)
        pred = (pred * coef).sum(axis=1, keepdims=True) + 16.0
        target = (target * coef).sum(axis=1, keepdims=True) + 16.0
        pred, target = pred / 255.0, target / 255.0
    mse = jnp.mean((pred - target) ** 2, axis=(1, 2, 3))
    return loss_weight * scale * jnp.mean(jnp.log(mse + 1e-8))


if __name__ == "__main__":
    key = jax.random.PRNGKey(0)

    # Case 1: plain PSNR loss.
    k1, k2 = jax.random.split(key)
    pred = jax.random.uniform(k1, (2, 4, 16, 16), dtype=jnp.float32)
    target = jax.random.uniform(k2, (2, 4, 16, 16), dtype=jnp.float32)
    out = jax.block_until_ready(psnr_loss(pred, target, loss_weight=1.0, toY=False))
    ref = _psnr_loss_ref(pred, target, loss_weight=1.0, toY=False)
    np.testing.assert_allclose(np.asarray(out), np.asarray(ref), rtol=1e-5, atol=1e-5)

    # Case 2: toY=True (RGB -> Y conversion fused in-kernel).
    k3, k4 = jax.random.split(k1)
    pred_y = jax.random.uniform(k3, (2, 3, 16, 16), dtype=jnp.float32)
    targ_y = jax.random.uniform(k4, (2, 3, 16, 16), dtype=jnp.float32)
    out_y = jax.block_until_ready(psnr_loss(pred_y, targ_y, loss_weight=0.5, toY=True))
    ref_y = _psnr_loss_ref(pred_y, targ_y, loss_weight=0.5, toY=True)
    np.testing.assert_allclose(np.asarray(out_y), np.asarray(ref_y), rtol=1e-5, atol=1e-5)

    # Case 3: C*H*W not a multiple of 128 (exercises the zero-padding path).
    k5, k6 = jax.random.split(k3)
    pred_p = jax.random.uniform(k5, (4, 3, 10, 10), dtype=jnp.float32)
    targ_p = jax.random.uniform(k6, (4, 3, 10, 10), dtype=jnp.float32)
    out_p = jax.block_until_ready(psnr_loss(pred_p, targ_p, loss_weight=1.0, toY=False))
    ref_p = _psnr_loss_ref(pred_p, targ_p, loss_weight=1.0, toY=False)
    np.testing.assert_allclose(np.asarray(out_p), np.asarray(ref_p), rtol=1e-5, atol=1e-5)

    print("KERNEL_OK")
</pallas_src>

<mosaic_0001>
module attributes {stable_mosaic.version = 11 : i64} {
  func.func @_psnr_kernel(%arg0: i32, %arg1: i32, %arg2: memref<2x1024xf32, #tpu.memory_space<vmem>>, %arg3: memref<2x1024xf32, #tpu.memory_space<vmem>>, %arg4: memref<2x1xf32, #tpu.memory_space<vmem>>, %arg5: memref<2x128xf32, #tpu.memory_space<vmem>>) attributes {dimension_semantics = [#tpu.dimension_semantics<parallel>, #tpu.dimension_semantics<arbitrary>], iteration_bounds = array<i64: 1, 1>, scalar_prefetch = 0 : i64, scratch_operands = 1 : i64, tpu.core_type = #tpu.core_type<tc>, window_params = [{transform_indices = @transform_0, window_bounds = array<i64: 2, 1024>}, {transform_indices = @transform_1, window_bounds = array<i64: 2, 1024>}, {transform_indices = @transform_2, window_bounds = array<i64: 2, 1>}]} {
    %c0_i32 = arith.constant 0 : i32
    %0 = arith.cmpi eq, %arg1, %c0_i32 : i32
    %1 = arith.extui %0 : i1 to i32
    %c0_i32_0 = arith.constant 0 : i32
    %2 = arith.cmpi ne, %1, %c0_i32_0 : i32
    scf.if %2 {
      %cst = arith.constant 0.000000e+00 : f32
      %28 = vector.broadcast %cst : f32 to vector<2x128xf32>
      %c0_10 = arith.constant 0 : index
      %c0_11 = arith.constant 0 : index
      %29 = vector.load %arg5[%c0_10, %c0_11] : memref<2x128xf32, #tpu.memory_space<vmem>>, vector<2x128xf32>
      tpu.vector_store %arg5[%c0_10, %c0_11], %28 {strides = array<i32>} : memref<2x128xf32, #tpu.memory_space<vmem>>, vector<2x128xf32>,
    } else {
    }
    %c0 = arith.constant 0 : index
    %c0_1 = arith.constant 0 : index
    %3 = vector.load %arg2[%c0, %c0_1] : memref<2x1024xf32, #tpu.memory_space<vmem>>, vector<2x1024xf32>
    %c0_2 = arith.constant 0 : index
    %c0_3 = arith.constant 0 : index
    %4 = vector.load %arg3[%c0_2, %c0_3] : memref<2x1024xf32, #tpu.memory_space<vmem>>, vector<2x1024xf32>
    %5 = arith.subf %3, %4 : vector<2x1024xf32>
    %6 = arith.mulf %5, %5 : vector<2x1024xf32>
    %7 = vector.extract_strided_slice %6 {offsets = [0, 0], sizes = [2, 128], strides = [1, 1]} : vector<2x1024xf32> to vector<2x128xf32>
    %8 = vector.extract_strided_slice %6 {offsets = [0, 128], sizes = [2, 128], strides = [1, 1]} : vector<2x1024xf32> to vector<2x128xf32>
    %9 = arith.addf %7, %8 : vector<2x128xf32>
    %10 = vector.extract_strided_slice %6 {offsets = [0, 256], sizes = [2, 128], strides = [1, 1]} : vector<2x1024xf32> to vector<2x128xf32>
    %11 = arith.addf %9, %10 : vector<2x128xf32>
    %12 = vector.extract_strided_slice %6 {offsets = [0, 384], sizes = [2, 128], strides = [1, 1]} : vector<2x1024xf32> to vector<2x128xf32>
    %13 = arith.addf %11, %12 : vector<2x128xf32>
    %14 = vector.extract_strided_slice %6 {offsets = [0, 512], sizes = [2, 128], strides = [1, 1]} : vector<2x1024xf32> to vector<2x128xf32>
    %15 = arith.addf %13, %14 : vector<2x128xf32>
    %16 = vector.extract_strided_slice %6 {offsets = [0, 640], sizes = [2, 128], strides = [1, 1]} : vector<2x1024xf32> to vector<2x128xf32>
    %17 = arith.addf %15, %16 : vector<2x128xf32>
    %18 = vector.extract_strided_slice %6 {offsets = [0, 768], sizes = [2, 128], strides = [1, 1]} : vector<2x1024xf32> to vector<2x128xf32>
    %19 = arith.addf %17, %18 : vector<2x128xf32>
    %20 = vector.extract_strided_slice %6 {offsets = [0, 896], sizes = [2, 128], strides = [1, 1]} : vector<2x1024xf32> to vector<2x128xf32>
    %21 = arith.addf %19, %20 : vector<2x128xf32>
    %c0_4 = arith.constant 0 : index
    %c0_5 = arith.constant 0 : index
    %22 = vector.load %arg5[%c0_4, %c0_5] : memref<2x128xf32, #tpu.memory_space<vmem>>, vector<2x128xf32>
    %23 = arith.addf %22, %21 : vector<2x128xf32>
    %c0_6 = arith.constant 0 : index
    %c0_7 = arith.constant 0 : index
    %24 = vector.load %arg5[%c0_6, %c0_7] : memref<2x128xf32, #tpu.memory_space<vmem>>, vector<2x128xf32>
    tpu.vector_store %arg5[%c0_6, %c0_7], %23 {strides = array<i32>} : memref<2x128xf32, #tpu.memory_space<vmem>>, vector<2x128xf32>,
    %c0_i32_8 = arith.constant 0 : i32
    %25 = arith.cmpi eq, %arg1, %c0_i32_8 : i32
    %26 = arith.extui %25 : i1 to i32
    %c0_i32_9 = arith.constant 0 : i32
    %27 = arith.cmpi ne, %26, %c0_i32_9 : i32
    scf.if %27 {
      %c0_10 = arith.constant 0 : index
      %c0_11 = arith.constant 0 : index
      %28 = vector.load %arg5[%c0_10, %c0_11] : memref<2x128xf32, #tpu.memory_space<vmem>>, vector<2x128xf32>
      %cst = arith.constant dense<0.000000e+00> : vector<2xf32>
      %29 = vector.multi_reduction <add>, %28, %cst [1] : vector<2x128xf32> to vector<2xf32>
      %30 = vector.shape_cast %29 : vector<2xf32> to vector<2x1xf32>
      %cst_12 = arith.constant 9.765625E-4 : f32
      %31 = vector.broadcast %cst_12 : f32 to vector<2x1xf32>
      %32 = arith.mulf %30, %31 : vector<2x1xf32>
      %cst_13 = arith.constant 9.99999993E-9 : f32
      %33 = vector.broadcast %cst_13 : f32 to vector<2x1xf32>
      %34 = arith.addf %32, %33 : vector<2x1xf32>
      %35 = math.log %34 : vector<2x1xf32>
      %c0_14 = arith.constant 0 : index
      %c0_15 = arith.constant 0 : index
      %36 = vector.load %arg4[%c0_14, %c0_15] : memref<2x1xf32, #tpu.memory_space<vmem>>, vector<2x1xf32>
      tpu.vector_store %arg4[%c0_14, %c0_15], %35 {strides = array<i32>} : memref<2x1xf32, #tpu.memory_space<vmem>>, vector<2x1xf32>,
    } else {
    }
    return
  }
  func.func @transform_0(%arg0: i32, %arg1: i32) -> (i32, i32) {
    %c0_i32 = arith.constant 0 : i32
    return %arg0, %arg1 : i32, i32
  }
  func.func @transform_1(%arg0: i32, %arg1: i32) -> (i32, i32) {
    %c0_i32 = arith.constant 0 : i32
    return %arg0, %arg1 : i32, i32
  }
  func.func @transform_2(%arg0: i32, %arg1: i32) -> (i32, i32) {
    %c0_i32 = arith.constant 0 : i32
    %c0_i32_0 = arith.constant 0 : i32
    return %arg0, %c0_i32 : i32, i32
  }
}

</mosaic_0001>

<llo_original>
// kernel: tpu_custom_call.1
$region0: #{tpu_custom_call.1}
  #allocation0 [shape = 'u32[]', space=smem, size = 0x4, offset = 0x4, fixed_abs, tag = 'smem constant byte address 0x4 - core index']
  #allocation1 [shape = 'u32[72,128]{1,0:T(1,128)}', space=vmem, size = 0x9000, scoped, tag = 'internal scratch']
  #allocation2 [shape = 'f32[2,128]{1,0:T(2,128)}', space=vmem, size = 0x400, scoped, tag = 'scratch operand']
  %s0 = inlined_call_operand.hbm [shape: f32[2,1024], index: 0, kind: input, shape index: {}]
  %s1 = inlined_call_operand.hbm [shape: f32[2,1024], index: 1, kind: input, shape index: {}]
  %s2 = inlined_call_operand.vmem [shape: f32[2,1], index: 2, kind: output, shape index: {}]
  %s3 = sld [smem:[#allocation0]]
  $region34: #{tpu_custom_call.1} parent=0
    _
  %s5 = ssub.s32 1, %s3
  %s6 = scalar_select 0, %s5, %s3
  $region1: #{tpu_custom_call.1} parent=0
    #allocation3 [shape = 'u8[8192]{0}', space=vmem, size = 0x2000, scoped, tag = 'input window, operand 0, single buffered']
    #allocation4 [shape = 's32[1]{0}', space=sflag, size = 0x4, scoped, tag = 'scoped memory for tpu_custom_call.1']
    #allocation5 [shape = 'u8[8192]{0}', space=vmem, size = 0x2000, scoped, tag = 'input window, operand 1, single buffered']
    #allocation6 [shape = 's32[1]{0}', space=sflag, size = 0x4, scoped, tag = 'scoped memory for tpu_custom_call.1']
    %7 = vsyncpa [#allocation4], 0
    %8 = vsyncpa [#allocation6], 0
    // Predicated region
    $region2: #{tpu_custom_call.1} parent=1 // pred_check
      _
    $region3: #{tpu_custom_call.1} parent=1 // pred_check_branch
      %10 = sbr.rel (0) target = $region5
    $region4: #{tpu_custom_call.1} parent=1 // pred_region
      %12 = vsyncadd [#allocation4], 0
      %s14 = sshll.u32 %s0, 4
      %s15 = int_to_ptr.hbm [resolvable:$true] %s14
      %s16 = sshll.u32 [#allocation3], 4
      %s17 = int_to_ptr.vmem [resolvable:$true] %s16
      %19 = dma.hbm_to_vmem [thread:$0]  %s15, 256, %s17, [#allocation4]
    $region5: #{tpu_custom_call.1} parent=1 // pred_fallthru
      _
    // Predicated region
    $region6: #{tpu_custom_call.1} parent=1 // pred_check
      _
    $region7: #{tpu_custom_call.1} parent=1 // pred_check_branch
      %21 = sbr.rel (0) target = $region9
    $region8: #{tpu_custom_call.1} parent=1 // pred_region
      %23 = vsyncadd [#allocation6], 0
      %s25 = sshll.u32 %s1, 4
      %s26 = int_to_ptr.hbm [resolvable:$true] %s25
      %s27 = sshll.u32 [#allocation5], 4
      %s28 = int_to_ptr.vmem [resolvable:$true] %s27
      %30 = dma.hbm_to_vmem [thread:$0]  %s26, 256, %s28, [#allocation6]
    $region9: #{tpu_custom_call.1} parent=1 // pred_fallthru
      _
    // Predicated region
    $region10: #{tpu_custom_call.1} parent=1 // pred_check
      _
    $region11: #{tpu_custom_call.1} parent=1 // pred_check_branch
      %32 = sbr.rel (0) target = $region13
    $region12: #{tpu_custom_call.1} parent=1 // pred_region
      %34 = dma.done [#allocation4], 256
    $region13: #{tpu_custom_call.1} parent=1 // pred_fallthru
      _
    // Predicated region
    $region14: #{tpu_custom_call.1} parent=1 // pred_check
      _
    $region15: #{tpu_custom_call.1} parent=1 // pred_check_branch
      %36 = sbr.rel (0) target = $region17
    $region16: #{tpu_custom_call.1} parent=1 // pred_region
      %38 = dma.done [#allocation6], 256
    $region17: #{tpu_custom_call.1} parent=1 // pred_fallthru
      _
    %p39 = scmp.eq.s32.totalorder 0, 0
    // Predicated region
    $region18: #{tpu_custom_call.1} parent=1 // pred_check
      %p40 = pneg %p39
    $region19: #{tpu_custom_call.1} parent=1 // pred_check_branch
      %42 = sbr.rel (%p40) target = $region21
    $region20: #{tpu_custom_call.1} parent=1 // pred_region
      %43 = vst [vmem:[#allocation2] sm:$0x3] 0.0
    $region21: #{tpu_custom_call.1} parent=1 // pred_fallthru
      _
    %v44 = vld [vmem:[#allocation3] sm:$0xff]
    %v45 = vld [vmem:[#allocation3 + $0x8] sm:$0xff]
    %v46 = vld [vmem:[#allocation5] sm:$0xff]
    %v47 = vld [vmem:[#allocation5 + $0x8] sm:$0xff]
    %v48 = vsub.f32 %v44, %v46
    %v49 = vsub.f32 %v45, %v47
    %v50 = vmul.f32 %v48, %v48
    %v51 = vmul.f32 %v49, %v49
    %v53 = vrot.slane %v50, 2
    %v55 = vadd.f32 %v50, %v53
    %v56 = vrot.slane %v50, 4
    %v58 = vadd.f32 %v55, %v56
    %v59 = vrot.slane %v50, 6
    %v61 = vadd.f32 %v58, %v59
    %v62 = vadd.f32 %v61, %v51
    %v64 = vrot.slane %v51, 2
    %v66 = vadd.f32 %v62, %v64
    %v67 = vrot.slane %v51, 4
    %v69 = vadd.f32 %v66, %v67
    %v70 = vrot.slane %v51, 6
    %v72 = vadd.f32 %v69, %v70
    %v73 = vld [vmem:[#allocation2] sm:$0x3]
    %v74 = vadd.f32 %v73, %v72
    %75 = vst [vmem:[#allocation2] sm:$0x3] %v74
    // Predicated region
    $region22: #{tpu_custom_call.1} parent=1 // pred_check
      %p76 = pneg %p39
    $region23: #{tpu_custom_call.1} parent=1 // pred_check_branch
      %78 = sbr.rel (%p76) target = $region25
    $region24: #{tpu_custom_call.1} parent=1 // pred_region
      %v79 = vld [vmem:[#allocation2] sm:$0x3]
      %vm80 = vcmask 1041408
      %v81 = vsel %vm80, %v79, 0.0
      %82 = vadd.xlane.f32.xlu0 %v81
      %v83 = vpop.xlane.xlu0 %82
      %v84 = vmul.f32 %v83, 0.0009765625
      %v85 = vadd.f32 %v84, 1e-08
      %v86 = vlog2.pop %v85
      %v87 = vmul.f32 %v86, 0.6931472
      %vm88 = vcmask 1024
      %89 = vst.msk [vmem:[%s2] sm:$0x3] %vm88, %v87
    $region25: #{tpu_custom_call.1} parent=1 // pred_fallthru
      _
    // Predicated region
    $region26: #{tpu_custom_call.1} parent=1 // pred_check
      _
    $region27: #{tpu_custom_call.1} parent=1 // pred_check_branch
      %91 = sbr.rel (0) target = $region29
    $region28: #{tpu_custom_call.1} parent=1 // pred_region
      _
    $region29: #{tpu_custom_call.1} parent=1 // pred_fallthru
      _
    // Predicated region
    $region30: #{tpu_custom_call.1} parent=1 // pred_check
      _
    $region31: #{tpu_custom_call.1} parent=1 // pred_check_branch
      %93 = sbr.rel (0) target = $region33
    $region32: #{tpu_custom_call.1} parent=1 // pred_region
      _
    $region33: #{tpu_custom_call.1} parent=1 // pred_fallthru
      _
    %94 = vsyncpa [#allocation4], 1
    %95 = vsyncpa [#allocation6], 1

</llo_original>
